<compile_context>
chip_gen: v6e
topology: v6e:2x2x1
jax: 0.10.0
libtpu: 0.0.40
codegen_flags: <defaults>
</compile_context>

<pallas_src>
import functools

import jax
import jax.numpy as jnp
from jax.experimental import pallas as pl
from jax.experimental.pallas import tpu as pltpu


def _round_up(n, m):
    return ((n + m - 1) // m) * m


def _basic_block_kernel(x_hbm, w1_ref, wl_ref, wr_ref, w2_ref, b2_ref,
                        o_ref, xbuf, sem, *,
                        lorder, rorder, lstride, rstride, tile_t, lhalo, rhalo):
    tile_ext = tile_t + lhalo + rhalo
    b = pl.program_id(0)
    j = pl.program_id(1)
    n_t = pl.num_programs(1)
    slot = j % 2

    def window_copy(jj, s):
        start = pl.multiple_of(jj * tile_t, tile_t)
        return pltpu.make_async_copy(
            x_hbm.at[b, pl.ds(start, tile_ext), :],
            xbuf.at[s],
            sem.at[s])

    # Prime the pipeline at the start of each batch's T-sweep.
    @pl.when(j == 0)
    def _():
        window_copy(0, 0).start()

    # Wait for the window of the current tile (started at j-1, or just above for j==0).
    window_copy(j, slot).wait()

    # Prefetch the next tile's window (same batch) into the other slot.
    @pl.when(j + 1 < n_t)
    def _():
        window_copy(j + 1, 1 - slot).start()

    # LinearTransform (no bias) on the halo-extended window -> MXU, f32 accumulate.
    xw = xbuf[slot]                                               # (tile_ext, Dpad)
    x1 = jnp.dot(xw, w1_ref[...],
                 preferred_element_type=jnp.float32)              # (tile_ext, Ppad) f32

    # FSMN: identity + left (causal) taps + right (lookahead) taps.
    # All shifts are static slices of the halo-extended x1 (no concat / zero fills).
    out = x1[lhalo:lhalo + tile_t, :]
    for k in range(lorder):
        off = lhalo - (lorder - 1 - k) * lstride
        out = out + x1[off:off + tile_t, :] * wl_ref[k, :][None, :]
    for k in range(rorder):
        off = lhalo + (k + 1) * rstride
        out = out + x1[off:off + tile_t, :] * wr_ref[k, :][None, :]

    # AffineTransform (with bias) + ReLU.
    x3 = jnp.dot(out.astype(w2_ref.dtype), w2_ref[...],
                 preferred_element_type=jnp.float32) + b2_ref[...]
    o_ref[0] = jnp.maximum(x3, 0.0).astype(o_ref.dtype)


def basic_block_forward(x, w1, wl, wr, w2, b2, *,
                        lorder, rorder, lstride, rstride,
                        tile_t=512, compute_dtype=jnp.float32):
    """x: (B, T, Dlin) f32. Returns (B, T, Dlin) f32."""
    B, T, Dlin = x.shape
    P = w1.shape[1]

    Dpad = _round_up(Dlin, 128)        # lane-dense feature dims
    Ppad = _round_up(P, 128)
    lhalo = (lorder - 1) * lstride     # FSMN left (causal) halo
    rhalo = rorder * rstride           # FSMN right (lookahead) halo

    tile_t = _round_up(min(tile_t, T), 8)
    n_t = pl.cdiv(T, tile_t)
    t_pad = n_t * tile_t
    tile_ext = tile_t + lhalo + rhalo

    # Zero-padded x in HBM: the time padding implements both the FSMN zero-padding at
    # sequence edges and the inter-tile halo; feature padding makes lanes dense.
    x_pad = jnp.zeros((B, lhalo + t_pad + rhalo, Dpad), compute_dtype)
    x_pad = x_pad.at[:, lhalo:lhalo + T, :Dlin].set(x.astype(compute_dtype))

    w1_p = jnp.zeros((Dpad, Ppad), compute_dtype).at[:Dlin, :P].set(w1.astype(compute_dtype))
    w2_p = jnp.zeros((Ppad, Dpad), compute_dtype).at[:P, :Dlin].set(w2.astype(compute_dtype))
    b2_p = jnp.zeros((1, Dpad), jnp.float32).at[0, :Dlin].set(b2.astype(jnp.float32))
    wl_p = jnp.zeros((lorder, Ppad), jnp.float32).at[:, :P].set(wl.astype(jnp.float32))
    r_rows = max(rorder, 1)
    wr_p = jnp.zeros((r_rows, Ppad), jnp.float32)
    if rorder > 0:
        wr_p = wr_p.at[:rorder, :P].set(wr[:rorder].astype(jnp.float32))

    kernel = functools.partial(
        _basic_block_kernel,
        lorder=lorder, rorder=rorder, lstride=lstride, rstride=rstride,
        tile_t=tile_t, lhalo=lhalo, rhalo=rhalo)

    out_pad = pl.pallas_call(
        kernel,
        out_shape=jax.ShapeDtypeStruct((B, t_pad, Dpad), jnp.float32),
        grid_spec=pltpu.PrefetchScalarGridSpec(
            num_scalar_prefetch=0,
            grid=(B, n_t),
            in_specs=[
                pl.BlockSpec(memory_space=pl.ANY),                  # x_pad stays in HBM, manual DMA
                pl.BlockSpec((Dpad, Ppad), lambda b, j: (0, 0)),    # W1
                pl.BlockSpec((lorder, Ppad), lambda b, j: (0, 0)),  # wL
                pl.BlockSpec((r_rows, Ppad), lambda b, j: (0, 0)),  # wR (dummy row if rorder==0)
                pl.BlockSpec((Ppad, Dpad), lambda b, j: (0, 0)),    # W2
                pl.BlockSpec((1, Dpad), lambda b, j: (0, 0)),       # b2
            ],
            out_specs=pl.BlockSpec((1, tile_t, Dpad), lambda b, j: (b, j, 0)),
            scratch_shapes=[
                pltpu.VMEM((2, tile_ext, Dpad), compute_dtype),     # double-buffered x window
                pltpu.SemaphoreType.DMA((2,)),
            ]),
        compiler_params=pltpu.CompilerParams(
            dimension_semantics=("parallel", "arbitrary"),
            vmem_limit_bytes=64 * 1024 * 1024),
    )(x_pad, w1_p, wl_p, wr_p, w2_p, b2_p)

    return out_pad[:, :T, :Dlin]


def basic_block_reference(x, w1, wl, wr, w2, b2, *, lorder, rorder, lstride, rstride):
    """Pure-JAX reference with identical semantics (for validation)."""
    B, T, Dlin = x.shape
    x1 = jnp.einsum("btd,dp->btp", x, w1)
    out = x1
    for k in range(lorder):
        s = (lorder - 1 - k) * lstride
        shifted = jnp.pad(x1, ((0, 0), (s, 0), (0, 0)))[:, :T, :]
        out = out + shifted * wl[k][None, None, :]
    for k in range(rorder):
        s = (k + 1) * rstride
        shifted = jnp.pad(x1, ((0, 0), (0, s), (0, 0)))[:, s:, :]
        out = out + shifted * wr[k][None, None, :]
    x3 = jnp.einsum("btp,pd->btd", out, w2) + b2[None, None, :]
    return jnp.maximum(x3, 0.0)


if __name__ == "__main__":
    # Small shapes consistent with the module; tile_t=16 forces multiple T-tiles so the
    # halo handling and cross-tile DMA prefetch are exercised.
    B, T = 2, 64
    linear_dim, proj_dim = 32, 16
    lorder, rorder, lstride, rstride = 4, 2, 1, 1

    key = jax.random.PRNGKey(0)
    k_x, k_w1, k_wl, k_wr, k_w2, k_b2 = jax.random.split(key, 6)

    x = jax.random.normal(k_x, (B, T, linear_dim), dtype=jnp.float32)
    # LinearTransform weight (stored already-transposed: (in, out))
    w1 = jax.random.normal(k_w1, (linear_dim, proj_dim), dtype=jnp.float32) * 0.1
    # Depthwise FSMN taps: wL[k, d] == conv_left.weight[d, 0, k, 0]
    wl = jax.random.normal(k_wl, (lorder, proj_dim), dtype=jnp.float32) * 0.1
    wr = jax.random.normal(k_wr, (rorder, proj_dim), dtype=jnp.float32) * 0.1
    # AffineTransform weight (in, out) + bias
    w2 = jax.random.normal(k_w2, (proj_dim, linear_dim), dtype=jnp.float32) * 0.1
    b2 = jax.random.normal(k_b2, (linear_dim,), dtype=jnp.float32) * 0.1

    out = basic_block_forward(
        x, w1, wl, wr, w2, b2,
        lorder=lorder, rorder=rorder, lstride=lstride, rstride=rstride,
        tile_t=16)
    out = jax.block_until_ready(out)

    ref = basic_block_reference(
        x, w1, wl, wr, w2, b2,
        lorder=lorder, rorder=rorder, lstride=lstride, rstride=rstride)

    assert out.shape == (B, T, linear_dim)
    assert jnp.allclose(out, ref, atol=1e-4, rtol=1e-4), "mismatch vs reference"

    # TODO(synk): streaming cache path (cache dict) and Dropout (train-only) are not
    # part of this forward-pass kernel.
    print("KERNEL_OK")
</pallas_src>

<mosaic_0001>
module attributes {stable_mosaic.version = 11 : i64} {
  func.func @_basic_block_kernel(%arg0: i32, %arg1: i32, %arg2: memref<2x69x128xf32, #tpu.memory_space<any>>, %arg3: memref<128x128xf32, #tpu.memory_space<vmem>>, %arg4: memref<4x128xf32, #tpu.memory_space<vmem>>, %arg5: memref<2x128xf32, #tpu.memory_space<vmem>>, %arg6: memref<128x128xf32, #tpu.memory_space<vmem>>, %arg7: memref<1x128xf32, #tpu.memory_space<vmem>>, %arg8: memref<1x16x128xf32, #tpu.memory_space<vmem>>, %arg9: memref<2x21x128xf32, #tpu.memory_space<vmem>>, %arg10: memref<2x!tpu.dma_semaphore, #tpu.memory_space<semaphore_mem>>) attributes {dimension_semantics = [#tpu.dimension_semantics<parallel>, #tpu.dimension_semantics<arbitrary>], iteration_bounds = array<i64: 2, 4>, scalar_prefetch = 0 : i64, scratch_operands = 2 : i64, tpu.core_type = #tpu.core_type<tc>, window_params = [{}, {pipeline_mode = #tpu.pipeline_mode<synchronous>, transform_indices = @transform_1, window_bounds = array<i64: 128, 128>}, {pipeline_mode = #tpu.pipeline_mode<synchronous>, transform_indices = @transform_2, window_bounds = array<i64: 4, 128>}, {pipeline_mode = #tpu.pipeline_mode<synchronous>, transform_indices = @transform_3, window_bounds = array<i64: 2, 128>}, {pipeline_mode = #tpu.pipeline_mode<synchronous>, transform_indices = @transform_4, window_bounds = array<i64: 128, 128>}, {pipeline_mode = #tpu.pipeline_mode<synchronous>, transform_indices = @transform_5, window_bounds = array<i64: 1, 128>}, {transform_indices = @transform_6, window_bounds = array<i64: 1, 16, 128>}]} {
    %c2_i32 = arith.constant 2 : i32
    %c0_i32 = arith.constant 0 : i32
    %0 = arith.cmpi eq, %c2_i32, %c0_i32 : i32
    %c1_i32 = arith.constant 1 : i32
    %1 = arith.select %0, %c1_i32, %c2_i32 : i32
    %2 = arith.remsi %arg1, %1 : i32
    %c0_i32_0 = arith.constant 0 : i32
    %3 = arith.cmpi ne, %2, %c0_i32_0 : i32
    %c0_i32_1 = arith.constant 0 : i32
    %4 = arith.cmpi slt, %2, %c0_i32_1 : i32
    %c0_i32_2 = arith.constant 0 : i32
    %5 = arith.cmpi slt, %1, %c0_i32_2 : i32
    %6 = arith.xori %4, %5 : i1
    %7 = arith.andi %6, %3 : i1
    %8 = arith.addi %2, %1 : i32
    %9 = arith.select %7, %8, %2 : i32
    %c0_i32_3 = arith.constant 0 : i32
    %10 = arith.cmpi eq, %arg1, %c0_i32_3 : i32
    %11 = arith.extui %10 : i1 to i32
    %c0_i32_4 = arith.constant 0 : i32
    %12 = arith.cmpi ne, %11, %c0_i32_4 : i32
    scf.if %12 {
      %c0_i32_31 = arith.constant 0 : i32
      %83 = tpu.assume_multiple %c0_i32_31, 16 : i32
      %c0_i32_32 = arith.constant 0 : i32
      %c0_i32_33 = arith.constant 0 : i32
      %c0_i32_34 = arith.constant 0 : i32
      %84 = tpu.memref_slice %arg2[%arg0, %83, %c0_i32_34] : memref<2x69x128xf32, #tpu.memory_space<any>> -> memref<1x21x128xf32, #tpu.memory_space<any>>
      %85 = tpu.memref_squeeze %84 : memref<1x21x128xf32, #tpu.memory_space<any>> -> memref<21x128xf32, #tpu.memory_space<any>>
      %c0_i32_35 = arith.constant 0 : i32
      %c0_i32_36 = arith.constant 0 : i32
      %86 = tpu.memref_slice %arg9[%c0_i32_32, %c0_i32_35, %c0_i32_36] : memref<2x21x128xf32, #tpu.memory_space<vmem>> -> memref<1x21x128xf32, #tpu.memory_space<vmem>>
      %87 = tpu.memref_squeeze %86 : memref<1x21x128xf32, #tpu.memory_space<vmem>> -> memref<21x128xf32, #tpu.memory_space<vmem>>
      %88 = tpu.memref_slice %arg10[%c0_i32_33] : memref<2x!tpu.dma_semaphore, #tpu.memory_space<semaphore_mem>> -> memref<1x!tpu.dma_semaphore, #tpu.memory_space<semaphore_mem>>
      %89 = tpu.memref_squeeze %88 : memref<1x!tpu.dma_semaphore, #tpu.memory_space<semaphore_mem>> -> memref<!tpu.dma_semaphore, #tpu.memory_space<semaphore_mem>>
      tpu.enqueue_dma source(%85 : memref<21x128xf32, #tpu.memory_space<any>>) target(%87 : memref<21x128xf32, #tpu.memory_space<vmem>>) target_semaphore(%89 : memref<!tpu.dma_semaphore, #tpu.memory_space<semaphore_mem>>)
    } else {
    }
    %c16_i32 = arith.constant 16 : i32
    %13 = arith.muli %arg1, %c16_i32 : i32
    %14 = tpu.assume_multiple %13, 16 : i32
    %c0_i32_5 = arith.constant 0 : i32
    %15 = tpu.memref_slice %arg2[%arg0, %14, %c0_i32_5] : memref<2x69x128xf32, #tpu.memory_space<any>> -> memref<1x21x128xf32, #tpu.memory_space<any>>
    %16 = tpu.memref_squeeze %15 : memref<1x21x128xf32, #tpu.memory_space<any>> -> memref<21x128xf32, #tpu.memory_space<any>>
    %c0_i32_6 = arith.constant 0 : i32
    %c0_i32_7 = arith.constant 0 : i32
    %17 = tpu.memref_slice %arg9[%9, %c0_i32_6, %c0_i32_7] : memref<2x21x128xf32, #tpu.memory_space<vmem>> -> memref<1x21x128xf32, #tpu.memory_space<vmem>>
    %18 = tpu.memref_squeeze %17 : memref<1x21x128xf32, #tpu.memory_space<vmem>> -> memref<21x128xf32, #tpu.memory_space<vmem>>
    %19 = tpu.memref_slice %arg10[%9] : memref<2x!tpu.dma_semaphore, #tpu.memory_space<semaphore_mem>> -> memref<1x!tpu.dma_semaphore, #tpu.memory_space<semaphore_mem>>
    %20 = tpu.memref_squeeze %19 : memref<1x!tpu.dma_semaphore, #tpu.memory_space<semaphore_mem>> -> memref<!tpu.dma_semaphore, #tpu.memory_space<semaphore_mem>>
    tpu.wait_dma2 semaphore(%20 : memref<!tpu.dma_semaphore, #tpu.memory_space<semaphore_mem>>) src(%16 : memref<21x128xf32, #tpu.memory_space<any>>) dst(%18 : memref<21x128xf32, #tpu.memory_space<vmem>>)
    %c1_i32_8 = arith.constant 1 : i32
    %21 = arith.addi %arg1, %c1_i32_8 : i32
    %c4_i32 = arith.constant 4 : i32
    %22 = arith.cmpi slt, %21, %c4_i32 : i32
    %23 = arith.extui %22 : i1 to i32
    %c0_i32_9 = arith.constant 0 : i32
    %24 = arith.cmpi ne, %23, %c0_i32_9 : i32
    scf.if %24 {
      %c1_i32_31 = arith.constant 1 : i32
      %83 = arith.addi %arg1, %c1_i32_31 : i32
      %c1_i32_32 = arith.constant 1 : i32
      %84 = arith.subi %c1_i32_32, %9 : i32
      %c16_i32_33 = arith.constant 16 : i32
      %85 = arith.muli %83, %c16_i32_33 : i32
      %86 = tpu.assume_multiple %85, 16 : i32
      %c0_i32_34 = arith.constant 0 : i32
      %87 = tpu.memref_slice %arg2[%arg0, %86, %c0_i32_34] : memref<2x69x128xf32, #tpu.memory_space<any>> -> memref<1x21x128xf32, #tpu.memory_space<any>>
      %88 = tpu.memref_squeeze %87 : memref<1x21x128xf32, #tpu.memory_space<any>> -> memref<21x128xf32, #tpu.memory_space<any>>
      %c0_i32_35 = arith.constant 0 : i32
      %c0_i32_36 = arith.constant 0 : i32
      %89 = tpu.memref_slice %arg9[%84, %c0_i32_35, %c0_i32_36] : memref<2x21x128xf32, #tpu.memory_space<vmem>> -> memref<1x21x128xf32, #tpu.memory_space<vmem>>
      %90 = tpu.memref_squeeze %89 : memref<1x21x128xf32, #tpu.memory_space<vmem>> -> memref<21x128xf32, #tpu.memory_space<vmem>>
      %91 = tpu.memref_slice %arg10[%84] : memref<2x!tpu.dma_semaphore, #tpu.memory_space<semaphore_mem>> -> memref<1x!tpu.dma_semaphore, #tpu.memory_space<semaphore_mem>>
      %92 = tpu.memref_squeeze %91 : memref<1x!tpu.dma_semaphore, #tpu.memory_space<semaphore_mem>> -> memref<!tpu.dma_semaphore, #tpu.memory_space<semaphore_mem>>
      tpu.enqueue_dma source(%88 : memref<21x128xf32, #tpu.memory_space<any>>) target(%90 : memref<21x128xf32, #tpu.memory_space<vmem>>) target_semaphore(%92 : memref<!tpu.dma_semaphore, #tpu.memory_space<semaphore_mem>>)
    } else {
    }
    %25 = arith.index_cast %9 : i32 to index
    %c0 = arith.constant 0 : index
    %c0_10 = arith.constant 0 : index
    %26 = vector.load %arg9[%25, %c0, %c0_10] : memref<2x21x128xf32, #tpu.memory_space<vmem>>, vector<1x21x128xf32>
    %27 = vector.shape_cast %26 : vector<1x21x128xf32> to vector<21x128xf32>
    %c0_11 = arith.constant 0 : index
    %c0_12 = arith.constant 0 : index
    %28 = vector.load %arg3[%c0_11, %c0_12] : memref<128x128xf32, #tpu.memory_space<vmem>>, vector<128x128xf32>
    %cst = arith.constant dense<0.000000e+00> : vector<21x128xf32>
    %29 = tpu.matmul %27, %28, %cst {dimension_numbers = #tpu.dot_dimension_numbers<[1], [0], [0], [1], [0, 0, 1, 1], [], []>} : vector<21x128xf32>, vector<128x128xf32>, vector<21x128xf32> -> vector<21x128xf32>
    %30 = vector.extract_strided_slice %29 {offsets = [3, 0], sizes = [16, 128], strides = [1, 1]} : vector<21x128xf32> to vector<16x128xf32>
    %31 = vector.extract_strided_slice %29 {offsets = [0, 0], sizes = [16, 128], strides = [1, 1]} : vector<21x128xf32> to vector<16x128xf32>
    %c0_13 = arith.constant 0 : index
    %c0_14 = arith.constant 0 : index
    %32 = vector.load %arg4[%c0_13, %c0_14] : memref<4x128xf32, #tpu.memory_space<vmem>>, vector<1x128xf32>
    %33 = vector.shape_cast %32 : vector<1x128xf32> to vector<128xf32>
    %34 = vector.shape_cast %33 : vector<128xf32> to vector<1x128xf32>
    %35 = vector.broadcast %34 : vector<1x128xf32> to vector<16x128xf32>
    %36 = arith.mulf %31, %35 : vector<16x128xf32>
    %37 = arith.addf %30, %36 : vector<16x128xf32>
    %38 = vector.extract_strided_slice %29 {offsets = [1, 0], sizes = [16, 128], strides = [1, 1]} : vector<21x128xf32> to vector<16x128xf32>
    %c1 = arith.constant 1 : index
    %c0_15 = arith.constant 0 : index
    %39 = vector.load %arg4[%c1, %c0_15] : memref<4x128xf32, #tpu.memory_space<vmem>>, vector<1x128xf32>
    %40 = vector.shape_cast %39 : vector<1x128xf32> to vector<128xf32>
    %41 = vector.shape_cast %40 : vector<128xf32> to vector<1x128xf32>
    %42 = vector.broadcast %41 : vector<1x128xf32> to vector<16x128xf32>
    %43 = arith.mulf %38, %42 : vector<16x128xf32>
    %44 = arith.addf %37, %43 : vector<16x128xf32>
    %45 = vector.extract_strided_slice %29 {offsets = [2, 0], sizes = [16, 128], strides = [1, 1]} : vector<21x128xf32> to vector<16x128xf32>
    %c2 = arith.constant 2 : index
    %c0_16 = arith.constant 0 : index
    %46 = vector.load %arg4[%c2, %c0_16] : memref<4x128xf32, #tpu.memory_space<vmem>>, vector<1x128xf32>
    %47 = vector.shape_cast %46 : vector<1x128xf32> to vector<128xf32>
    %48 = vector.shape_cast %47 : vector<128xf32> to vector<1x128xf32>
    %49 = vector.broadcast %48 : vector<1x128xf32> to vector<16x128xf32>
    %50 = arith.mulf %45, %49 : vector<16x128xf32>
    %51 = arith.addf %44, %50 : vector<16x128xf32>
    %52 = vector.extract_strided_slice %29 {offsets = [3, 0], sizes = [16, 128], strides = [1, 1]} : vector<21x128xf32> to vector<16x128xf32>
    %c3 = arith.constant 3 : index
    %c0_17 = arith.constant 0 : index
    %53 = vector.load %arg4[%c3, %c0_17] : memref<4x128xf32, #tpu.memory_space<vmem>>, vector<1x128xf32>
    %54 = vector.shape_cast %53 : vector<1x128xf32> to vector<128xf32>
    %55 = vector.shape_cast %54 : vector<128xf32> to vector<1x128xf32>
    %56 = vector.broadcast %55 : vector<1x128xf32> to vector<16x128xf32>
    %57 = arith.mulf %52, %56 : vector<16x128xf32>
    %58 = arith.addf %51, %57 : vector<16x128xf32>
    %59 = vector.extract_strided_slice %29 {offsets = [4, 0], sizes = [16, 128], strides = [1, 1]} : vector<21x128xf32> to vector<16x128xf32>
    %c0_18 = arith.constant 0 : index
    %c0_19 = arith.constant 0 : index
    %60 = vector.load %arg5[%c0_18, %c0_19] : memref<2x128xf32, #tpu.memory_space<vmem>>, vector<1x128xf32>
    %61 = vector.shape_cast %60 : vector<1x128xf32> to vector<128xf32>
    %62 = vector.shape_cast %61 : vector<128xf32> to vector<1x128xf32>
    %63 = vector.broadcast %62 : vector<1x128xf32> to vector<16x128xf32>
    %64 = arith.mulf %59, %63 : vector<16x128xf32>
    %65 = arith.addf %58, %64 : vector<16x128xf32>
    %66 = vector.extract_strided_slice %29 {offsets = [5, 0], sizes = [16, 128], strides = [1, 1]} : vector<21x128xf32> to vector<16x128xf32>
    %c1_20 = arith.constant 1 : index
    %c0_21 = arith.constant 0 : index
    %67 = vector.load %arg5[%c1_20, %c0_21] : memref<2x128xf32, #tpu.memory_space<vmem>>, vector<1x128xf32>
    %68 = vector.shape_cast %67 : vector<1x128xf32> to vector<128xf32>
    %69 = vector.shape_cast %68 : vector<128xf32> to vector<1x128xf32>
    %70 = vector.broadcast %69 : vector<1x128xf32> to vector<16x128xf32>
    %71 = arith.mulf %66, %70 : vector<16x128xf32>
    %72 = arith.addf %65, %71 : vector<16x128xf32>
    %c0_22 = arith.constant 0 : index
    %c0_23 = arith.constant 0 : index
    %73 = vector.load %arg6[%c0_22, %c0_23] : memref<128x128xf32, #tpu.memory_space<vmem>>, vector<128x128xf32>
    %cst_24 = arith.constant dense<0.000000e+00> : vector<16x128xf32>
    %74 = tpu.matmul %72, %73, %cst_24 {dimension_numbers = #tpu.dot_dimension_numbers<[1], [0], [0], [1], [0, 0, 1, 1], [], []>} : vector<16x128xf32>, vector<128x128xf32>, vector<16x128xf32> -> vector<16x128xf32>
    %c0_25 = arith.constant 0 : index
    %c0_26 = arith.constant 0 : index
    %75 = vector.load %arg7[%c0_25, %c0_26] : memref<1x128xf32, #tpu.memory_space<vmem>>, vector<1x128xf32>
    %76 = vector.broadcast %75 : vector<1x128xf32> to vector<16x128xf32>
    %77 = arith.addf %74, %76 : vector<16x128xf32>
    %cst_27 = arith.constant 0.000000e+00 : f32
    %78 = vector.broadcast %cst_27 : f32 to vector<16x128xf32>
    %79 = arith.maximumf %77, %78 : vector<16x128xf32>
    %c0_28 = arith.constant 0 : index
    %c0_29 = arith.constant 0 : index
    %c0_30 = arith.constant 0 : index
    %80 = vector.load %arg8[%c0_28, %c0_29, %c0_30] : memref<1x16x128xf32, #tpu.memory_space<vmem>>, vector<1x16x128xf32>
    %81 = vector.shape_cast %80 : vector<1x16x128xf32> to vector<16x128xf32>
    %82 = vector.shape_cast %79 : vector<16x128xf32> to vector<1x16x128xf32>
    tpu.vector_store %arg8[%c0_28, %c0_29, %c0_30], %82 {strides = array<i32>} : memref<1x16x128xf32, #tpu.memory_space<vmem>>, vector<1x16x128xf32>,
    return
  }
  func.func @transform_1(%arg0: i32, %arg1: i32) -> (i32, i32) {
    %c0_i32 = arith.constant 0 : i32
    %c0_i32_0 = arith.constant 0 : i32
    %c0_i32_1 = arith.constant 0 : i32
    return %c0_i32, %c0_i32_0 : i32, i32
  }
  func.func @transform_2(%arg0: i32, %arg1: i32) -> (i32, i32) {
    %c0_i32 = arith.constant 0 : i32
    %c0_i32_0 = arith.constant 0 : i32
    %c0_i32_1 = arith.constant 0 : i32
    return %c0_i32, %c0_i32_0 : i32, i32
  }
  func.func @transform_3(%arg0: i32, %arg1: i32) -> (i32, i32) {
    %c0_i32 = arith.constant 0 : i32
    %c0_i32_0 = arith.constant 0 : i32
    %c0_i32_1 = arith.constant 0 : i32
    return %c0_i32, %c0_i32_0 : i32, i32
  }
  func.func @transform_4(%arg0: i32, %arg1: i32) -> (i32, i32) {
    %c0_i32 = arith.constant 0 : i32
    %c0_i32_0 = arith.constant 0 : i32
    %c0_i32_1 = arith.constant 0 : i32
    return %c0_i32, %c0_i32_0 : i32, i32
  }
  func.func @transform_5(%arg0: i32, %arg1: i32) -> (i32, i32) {
    %c0_i32 = arith.constant 0 : i32
    %c0_i32_0 = arith.constant 0 : i32
    %c0_i32_1 = arith.constant 0 : i32
    return %c0_i32, %c0_i32_0 : i32, i32
  }
  func.func @transform_6(%arg0: i32, %arg1: i32) -> (i32, i32, i32) {
    %c0_i32 = arith.constant 0 : i32
    %c0_i32_0 = arith.constant 0 : i32
    return %arg0, %arg1, %c0_i32 : i32, i32, i32
  }
}

</mosaic_0001>

<llo_original>
// kernel: tpu_custom_call.1
$region0: #{tpu_custom_call.1}
  #allocation0 [shape = 'u32[]', space=smem, size = 0x4, offset = 0x4, fixed_abs, tag = 'smem constant byte address 0x4 - core index']
  #allocation1 [shape = 'u32[144,128]{1,0:T(1,128)}', space=vmem, size = 0x12000, scoped, tag = 'internal scratch']
  #allocation2 [shape = 'f32[2,21,128]{2,1,0:T(8,128)}', space=vmem, size = 0x6000, scoped, tag = 'scratch operand']
  #allocation3 [shape = 's32[2]{0}', space=sflag, size = 0x8, scoped, tag = 'scratch operand']
  #allocation6 [shape = 's32[]', space=sflag, size = 0x4, offset = 0, fixed_abs, tag = 'sflag constant byte address 0x0 - dummy sync flag']
  #allocation7 [shape = 's32[]', space=sflag, size = 0x4, offset = 0, fixed_abs, tag = 'sflag constant byte address 0x0 - dummy sync flag']
  %s0 = inlined_call_operand.vmem [shape: f32[2,69,128], index: 0, kind: input, shape index: {}]
  %s1 = inlined_call_operand.vmem [shape: f32[128,128], index: 1, kind: input, shape index: {}]
  %s2 = inlined_call_operand.vmem [shape: f32[4,128], index: 2, kind: input, shape index: {}]
  %s3 = inlined_call_operand.vmem [shape: f32[2,128], index: 3, kind: input, shape index: {}]
  %s4 = inlined_call_operand.vmem [shape: f32[128,128], index: 4, kind: input, shape index: {}]
  %s5 = inlined_call_operand.vmem [shape: f32[1,128], index: 5, kind: input, shape index: {}]
  %s6 = inlined_call_operand.hbm [shape: f32[2,64,128], index: 6, kind: output, shape index: {}]
  %s7 = sld [smem:[#allocation0]]
  $region135: #{tpu_custom_call.1} parent=0
    _
  %s9 = ssub.s32 1, %s7
  %s10 = scalar_select 0, %s9, %s7
  $region1: #{tpu_custom_call.1} parent=0
    #allocation4 [shape = 'u8[16384]{0}', space=vmem, size = 0x4000, scoped, tag = 'output window, operand 0']
    #allocation5 [shape = 's32[2]{0}', space=sflag, size = 0x8, scoped, tag = 'scoped memory for tpu_custom_call.1']
    %11 = vsyncpa [#allocation5], 0
    %s12 = scalar_lea.sflag [#allocation5], 1
    %13 = vsyncpa %s12, 0
    loop: start=0, step=1, limit=10
    $region2: #{tpu_custom_call.1} parent=1 // loop_pre_header
      _
    $region3: #{tpu_custom_call.1} parent=1 // loop_header
      %s15 = sphi 0, %s19
      %p16 = scmp.ge.s32.totalorder %s15, 10
      %s22 = sphi 0, %s34
      %s23 = sphi 0, %s30
      %s24 = sphi 0, %s22
      %s25 = sphi 0, %s23
      %s26 = sphi 0, %s24
      %s27 = sphi 0, %s25
      %s35 = sphi 0, %s35
      %s37 = sphi 0, %s35
      %s38 = sphi 0, %s37
      %s52 = sphi 0, %s38
      %s56 = sphi 0, %s56
      %s58 = sphi 0, %s56
      %s59 = sphi 0, %s58
      %s73 = sphi 0, %s59
      %s77 = sphi 0, %s77
      %s79 = sphi 0, %s77
      %s80 = sphi 0, %s79
      %s94 = sphi 0, %s80
      %s98 = sphi 0, %s98
      %s100 = sphi 0, %s98
      %s101 = sphi 0, %s100
      %s115 = sphi 0, %s101
      %s119 = sphi 0, %s119
      %s121 = sphi 0, %s119
      %s122 = sphi 0, %s121
      %s136 = sphi 0, %s122
      %s144 = sphi 0, %s146
      %s147 = sphi 0, %s144
      %s148 = sphi 0, %s147
      %s164 = sphi 0, %s148
    $region4: #{tpu_custom_call.1} parent=1 // loop_header_branch
      %18 = sbr.rel (%p16) target = $region8
    $region5: #{tpu_custom_call.1} parent=1 // loop_body
      %s20 = ssub.s32 %s15, 1
      %s21 = ssub.s32 %s15, 2
      %s28 = sadd.s32 1, %s23
      %p29 = scmp.ge.s32.totalorder %s28, 4
      %s30 = scalar_select %p29, 0, %s28
      %s31 = sadd.s32 1, %s22
      %s32 = scalar_select %p29, %s31, %s22
      %p33 = scmp.ge.s32.totalorder %s32, 2
      %s34 = scalar_select %p33, 0, %s32
      %s36 = sadd.s32 %s35, 1
      %p39 = scmp.eq.s32.totalorder %s15, 7
      %p40 = scmp.ne.s32.totalorder %s35, %s37
      %p41 = scmp.eq.s32.totalorder %s15, 0
      %p42 = por %p40, %p41
      %p43 = scmp.ne.s32.totalorder %s35, %s37
      %p44 = scmp.eq.s32.totalorder %s20, 7
      %p45 = por %p43, %p44
      %p46 = scmp.ne.s32.totalorder %s37, %s38
      %p47 = scmp.eq.s32.totalorder %s20, 0
      %p48 = por %p46, %p47
      %p49 = scmp.ne.s32.totalorder %s37, %s38
      %p50 = scmp.eq.s32.totalorder %s21, 7
      %p51 = por %p49, %p50
      %p53 = scmp.ne.s32.totalorder %s38, %s52
      %p54 = scmp.eq.s32.totalorder %s21, 0
      %p55 = por %p53, %p54
      %s57 = sadd.s32 %s56, 1
      %p60 = scmp.eq.s32.totalorder %s15, 7
      %p61 = scmp.ne.s32.totalorder %s56, %s58
      %p62 = scmp.eq.s32.totalorder %s15, 0
      %p63 = por %p61, %p62
      %p64 = scmp.ne.s32.totalorder %s56, %s58
      %p65 = scmp.eq.s32.totalorder %s20, 7
      %p66 = por %p64, %p65
      %p67 = scmp.ne.s32.totalorder %s58, %s59
      %p68 = scmp.eq.s32.totalorder %s20, 0
      %p69 = por %p67, %p68
      %p70 = scmp.ne.s32.totalorder %s58, %s59
      %p71 = scmp.eq.s32.totalorder %s21, 7
      %p72 = por %p70, %p71
      %p74 = scmp.ne.s32.totalorder %s59, %s73
      %p75 = scmp.eq.s32.totalorder %s21, 0
      %p76 = por %p74, %p75
      %s78 = sadd.s32 %s77, 1
      %p81 = scmp.eq.s32.totalorder %s15, 7
      %p82 = scmp.ne.s32.totalorder %s77, %s79
      %p83 = scmp.eq.s32.totalorder %s15, 0
      %p84 = por %p82, %p83
      %p85 = scmp.ne.s32.totalorder %s77, %s79
      %p86 = scmp.eq.s32.totalorder %s20, 7
      %p87 = por %p85, %p86
      %p88 = scmp.ne.s32.totalorder %s79, %s80
      %p89 = scmp.eq.s32.totalorder %s20, 0
      %p90 = por %p88, %p89
      %p91 = scmp.ne.s32.totalorder %s79, %s80
      %p92 = scmp.eq.s32.totalorder %s21, 7
      %p93 = por %p91, %p92
      %p95 = scmp.ne.s32.totalorder %s80, %s94
      %p96 = scmp.eq.s32.totalorder %s21, 0
      %p97 = por %p95, %p96
      %s99 = sadd.s32 %s98, 1
      %p102 = scmp.eq.s32.totalorder %s15, 7
      %p103 = scmp.ne.s32.totalorder %s98, %s100
      %p104 = scmp.eq.s32.totalorder %s15, 0
      %p105 = por %p103, %p104
      %p106 = scmp.ne.s32.totalorder %s98, %s100
      %p107 = scmp.eq.s32.totalorder %s20, 7
      %p108 = por %p106, %p107
      %p109 = scmp.ne.s32.totalorder %s100, %s101
      %p110 = scmp.eq.s32.totalorder %s20, 0
      %p111 = por %p109, %p110
      %p112 = scmp.ne.s32.totalorder %s100, %s101
      %p113 = scmp.eq.s32.totalorder %s21, 7
      %p114 = por %p112, %p113
      %p116 = scmp.ne.s32.totalorder %s101, %s115
      %p117 = scmp.eq.s32.totalorder %s21, 0
      %p118 = por %p116, %p117
      %s120 = sadd.s32 %s119, 1
      %p123 = scmp.eq.s32.totalorder %s15, 7
      %p124 = scmp.ne.s32.totalorder %s119, %s121
      %p125 = scmp.eq.s32.totalorder %s15, 0
      %p126 = por %p124, %p125
      %p127 = scmp.ne.s32.totalorder %s119, %s121
      %p128 = scmp.eq.s32.totalorder %s20, 7
      %p129 = por %p127, %p128
      %p130 = scmp.ne.s32.totalorder %s121, %s122
      %p131 = scmp.eq.s32.totalorder %s20, 0
      %p132 = por %p130, %p131
      %p133 = scmp.ne.s32.totalorder %s121, %s122
      %p134 = scmp.eq.s32.totalorder %s21, 7
      %p135 = por %p133, %p134
      %p137 = scmp.ne.s32.totalorder %s122, %s136
      %p138 = scmp.eq.s32.totalorder %s21, 0
      %p139 = por %p137, %p138
      %s140 = ssub.s32 %s22, %s34
      %s141 = ssub.s32 %s23, %s30
      %s142 = sor.u32 %s140, %s141
      %p143 = scmp.eq.s32.totalorder %s142, 0
      %s145 = sadd.s32 %s144, 1
      %s146 = scalar_select %p143, %s144, %s145
      %p149 = pneg %p143
      %p150 = scmp.eq.s32.totalorder %s15, 7
      %p151 = por %p149, %p150
      %p152 = scmp.ne.s32.totalorder %s144, %s147
      %p153 = scmp.eq.s32.totalorder %s15, 0
      %p154 = por %p152, %p153
      %p155 = scmp.ne.s32.totalorder %s144, %s147
      %p156 = scmp.eq.s32.totalorder %s20, 7
      %p157 = por %p155, %p156
      %p158 = scmp.ne.s32.totalorder %s147, %s148
      %p159 = scmp.eq.s32.totalorder %s20, 0
      %p160 = por %p158, %p159
      %p161 = scmp.ne.s32.totalorder %s147, %s148
      %p162 = scmp.eq.s32.totalorder %s21, 7
      %p163 = por %p161, %p162
      %p165 = scmp.ne.s32.totalorder %s148, %s164
      %p166 = scmp.eq.s32.totalorder %s21, 0
      %p167 = por %p165, %p166
      %p168 = scmp.le.s32.totalorder 1, %s15
      %p169 = scmp.lt.s32.totalorder %s15, 9
      %p170 = pnand %p168, %p169
      %p171 = pneg %p170
      // Predicated region
      $region9: #{tpu_custom_call.1} parent=5 // pred_check
        _
      $region10: #{tpu_custom_call.1} parent=5 // pred_check_branch
        %173 = sbr.rel (%p170) target = $region12
      $region11: #{tpu_custom_call.1} parent=5 // pred_region
        %s174 = ssub.s32 %s15, 1
        // Predicated region
        $region13: #{tpu_custom_call.1} parent=11 // pred_check
          %p175 = pneg %p48
        $region14: #{tpu_custom_call.1} parent=11 // pred_check_branch
          %177 = sbr.rel (%p175) target = $region16
        $region15: #{tpu_custom_call.1} parent=11 // pred_region
          _
        $region16: #{tpu_custom_call.1} parent=11 // pred_fallthru
          _
        // Predicated region
        $region17: #{tpu_custom_call.1} parent=11 // pred_check
          %p178 = pneg %p69
        $region18: #{tpu_custom_call.1} parent=11 // pred_check_branch
          %180 = sbr.rel (%p178) target = $region20
        $region19: #{tpu_custom_call.1} parent=11 // pred_region
          _
        $region20: #{tpu_custom_call.1} parent=11 // pred_fallthru
          _
        // Predicated region
        $region21: #{tpu_custom_call.1} parent=11 // pred_check
          %p181 = pneg %p90
        $region22: #{tpu_custom_call.1} parent=11 // pred_check_branch
          %183 = sbr.rel (%p181) target = $region24
        $region23: #{tpu_custom_call.1} parent=11 // pred_region
          _
        $region24: #{tpu_custom_call.1} parent=11 // pred_fallthru
          _
        // Predicated region
        $region25: #{tpu_custom_call.1} parent=11 // pred_check
          %p184 = pneg %p111
        $region26: #{tpu_custom_call.1} parent=11 // pred_check_branch
          %186 = sbr.rel (%p184) target = $region28
        $region27: #{tpu_custom_call.1} parent=11 // pred_region
          _
        $region28: #{tpu_custom_call.1} parent=11 // pred_fallthru
          _
        // Predicated region
        $region29: #{tpu_custom_call.1} parent=11 // pred_check
          %p187 = pneg %p132
        $region30: #{tpu_custom_call.1} parent=11 // pred_check_branch
          %189 = sbr.rel (%p187) target = $region32
        $region31: #{tpu_custom_call.1} parent=11 // pred_region
          _
        $region32: #{tpu_custom_call.1} parent=11 // pred_fallthru
          _
      $region12: #{tpu_custom_call.1} parent=5 // pred_fallthru
        _
      %p190 = scmp.lt.s32.totalorder %s15, 8
      // Predicated region
      $region33: #{tpu_custom_call.1} parent=5 // pred_check
        %p191 = pneg %p190
      $region34: #{tpu_custom_call.1} parent=5 // pred_check_branch
        %193 = sbr.rel (%p191) target = $region36
      $region35: #{tpu_custom_call.1} parent=5 // pred_region
        _
      $region36: #{tpu_custom_call.1} parent=5 // pred_fallthru
        _
      %p194 = scmp.le.s32.totalorder 1, %s15
      %p195 = scmp.lt.s32.totalorder %s15, 9
      %p196 = pnand %p194, %p195
      %p197 = pneg %p196
      // Predicated region
      $region37: #{tpu_custom_call.1} parent=5 // pred_check
        _
      $region38: #{tpu_custom_call.1} parent=5 // pred_check_branch
        %199 = sbr.rel (%p196) target = $region40
      $region39: #{tpu_custom_call.1} parent=5 // pred_region
        %s200 = ssub.s32 %s15, 1
        %p201 = pneg %p48
        %p202 = pneg %p45
        %p203 = pneg %p69
        %p204 = pneg %p66
        %p205 = pneg %p90
        %p206 = pneg %p87
        %p207 = pneg %p111
        %p208 = pneg %p108
        %p209 = pneg %p132
        %p210 = pneg %p129
        %p211 = pneg %p160
        %p212 = pneg %p157
        %s213 = sand.u32 %s147, 1
        %s214 = scalar_lea.sflag [#allocation5], %s213
        %s215 = sand.u32 %s147, 1
        %s216 = smul.addr %s215, 16
        %s217 = scalar_lea.vmem [#allocation4], %s216
        %s218 = smul.u32 2, %s25
        %p219 = scmp.lt.s32.totalorder %s25, 0
        %s220 = ssub.s32 0, %s25
        %s221 = scalar_select %p219, %s220, %s25
        %s222 = sand.u32 %s221, 1
        %s223 = ssub.s32 0, %s222
        %s224 = scalar_select %p219, %s223, %s222
        %p225 = scmp.ne.s32.totalorder %s224, 0
        %p226 = scmp.lt.s32.totalorder %s224, 0
        %p227 = pnand %p226, %p225
        %p228 = pneg %p227
        %s229 = sadd.s32 %s224, 2
        %s230 = scalar_select %p228, %s229, %s224
        %p231 = scmp.eq.s32.totalorder %s25, 0
        // Predicated region
        $region41: #{tpu_custom_call.1} parent=39 // pred_check
          %p232 = pneg %p231
        $region42: #{tpu_custom_call.1} parent=39 // pred_check_branch
          %234 = sbr.rel (%p232) target = $region44
        $region43: #{tpu_custom_call.1} parent=39 // pred_region
          %s235 = smul.u32 %s24, 72
          %s236 = sadd.s32 0, %s235
          %s237 = scalar_lea.vmem %s0, %s236
          %p239 = scmp.lt.u32.totalorder 21, 8
          %p240 = pneg %p239
          // Predicated region
          $region45: #{tpu_custom_call.1} parent=43 // pred_check
            _
          $region46: #{tpu_custom_call.1} parent=43 // pred_check_branch
            %242 = sbr.rel (%p239) target = $region48
          $region47: #{tpu_custom_call.1} parent=43 // pred_region
            %s258 = sand.u32 21, 7
            %p259 = scmp.eq.s32.totalorder %s258, 0
            %p260 = pneg %p259
            // Predicated region
            $region60: #{tpu_custom_call.1} parent=47 // pred_check
              _
            $region61: #{tpu_custom_call.1} parent=47 // pred_check_branch
              %262 = sbr.rel (%p259) target = $region63
            $region62: #{tpu_custom_call.1} parent=47 // pred_region
              %s263 = sand.u32 21, 7
              %s264 = ssub.s32 21, %s263
              %s265 = scalar_lea.vmem %s237, %s264
              %s266 = ssub.s32 21, %s263
              %s267 = scalar_lea.vmem [#allocation2], %s266
              loop: start=0, step=1, limit=1
              $region64: #{tpu_custom_call.1} parent=62 // loop_pre_header
                _
              $region65: #{tpu_custom_call.1} parent=62 // loop_header
                %s269 = sphi 0, %s273
                %p270 = scmp.ge.s32.totalorder %s269, 1
                %s274 = sphi %s237, %s237
                %s275 = sphi [#allocation2], [#allocation2]
              $region66: #{tpu_custom_call.1} parent=62 // loop_header_branch
                %272 = sbr.rel (%p270) target = $region70
              $region67: #{tpu_custom_call.1} parent=62 // loop_body
                %v276 = vld [vmem:[%s274] sm:$0xff]
                %277 = vst [vmem:[%s275] sm:$0xff] %v276
                %v278 = vld [vmem:[%s274 + $0x8] sm:$0xff]
                %279 = vst [vmem:[%s275 + $0x8] sm:$0xff] %v278
              $region68: #{tpu_custom_call.1} parent=62 // loop_footer
                %s273 = sadd.s32 1, %s269
              $region69: #{tpu_custom_call.1} parent=62 // loop_footer_branch
                %268 = sbr.rel target = $region65
              $region70: #{tpu_custom_call.1} parent=62 // loop_exit
                _
              %s280 = sshll.u32 1, %s263
              %s281 = ssub.s32 %s280, 1
              loop: start=0, step=1, limit=1
              $region71: #{tpu_custom_call.1} parent=62 // loop_pre_header
                _
              $region72: #{tpu_custom_call.1} parent=62 // loop_header
                %s283 = sphi 0, %s287
                %p284 = scmp.ge.s32.totalorder %s283, 1
                %s288 = sphi %s265, %s265
                %s289 = sphi %s267, %s267
              $region73: #{tpu_custom_call.1} parent=62 // loop_header_branch
                %286 = sbr.rel (%p284) target = $region77
              $region74: #{tpu_custom_call.1} parent=62 // loop_body
                %v290 = vld [vmem:[%s288] sm:%s281]
                %291 = vst [vmem:[%s289] sm:%s281] %v290
              $region75: #{tpu_custom_call.1} parent=62 // loop_footer
                %s287 = sadd.s32 1, %s283
              $region76: #{tpu_custom_call.1} parent=62 // loop_footer_branch
                %282 = sbr.rel target = $region72
              $region77: #{tpu_custom_call.1} parent=62 // loop_exit
                _
            $region63: #{tpu_custom_call.1} parent=47 // pred_fallthru
              _
          $region48: #{tpu_custom_call.1} parent=43 // pred_fallthru
            _
          // Predicated region
          $region49: #{tpu_custom_call.1} parent=43 // pred_check
            %p243 = pneg %p239
          $region50: #{tpu_custom_call.1} parent=43 // pred_check_branch
            %245 = sbr.rel (%p243) target = $region52
          $region51: #{tpu_custom_call.1} parent=43 // pred_region
            %s246 = sshll.u32 1, 21
            %s247 = ssub.s32 %s246, 1
            loop: start=0, step=1, limit=1
            $region53: #{tpu_custom_call.1} parent=51 // loop_pre_header
              _
            $region54: #{tpu_custom_call.1} parent=51 // loop_header
              %s249 = sphi 0, %s253
              %p250 = scmp.ge.s32.totalorder %s249, 1
              %s254 = sphi %s237, %s237
              %s255 = sphi [#allocation2], [#allocation2]
            $region55: #{tpu_custom_call.1} parent=51 // loop_header_branch
              %252 = sbr.rel (%p250) target = $region59
            $region56: #{tpu_custom_call.1} parent=51 // loop_body
              %v256 = vld [vmem:[%s254] sm:%s247]
              %257 = vst [vmem:[%s255] sm:%s247] %v256
            $region57: #{tpu_custom_call.1} parent=51 // loop_footer
              %s253 = sadd.s32 1, %s249
            $region58: #{tpu_custom_call.1} parent=51 // loop_footer_branch
              %248 = sbr.rel target = $region54
            $region59: #{tpu_custom_call.1} parent=51 // loop_exit
              _
          $region52: #{tpu_custom_call.1} parent=43 // pred_fallthru
            _
          // Predicated region
          $region78: #{tpu_custom_call.1} parent=43 // pred_check
            _
          $region79: #{tpu_custom_call.1} parent=43 // pred_check_branch
            %294 = sbr.rel (0) target = $region81
          $region80: #{tpu_custom_call.1} parent=43 // pred_region
            %295 = vsyncadd [#allocation3], 336
          $region81: #{tpu_custom_call.1} parent=43 // pred_fallthru
            _
        $region44: #{tpu_custom_call.1} parent=39 // pred_fallthru
          _
        %s296 = smul.u32 %s25, 16
        %s297 = smul.u32 %s230, 24
        %s298 = scalar_lea.vmem [#allocation2], %s297
        %s299 = scalar_lea.sflag [#allocation3], %s230
        %s300 = smul.u32 21, 1
        %s301 = sshll.u32 %s300, 4
        %302 = dma.done %s299, %s301
        %s303 = sadd.s32 %s25, 1
        %p304 = scmp.lt.s32.totalorder %s303, 4
        // Predicated region
        $region82: #{tpu_custom_call.1} parent=39 // pred_check
          %p305 = pneg %p304
        $region83: #{tpu_custom_call.1} parent=39 // pred_check_branch
          %307 = sbr.rel (%p305) target = $region85
        $region84: #{tpu_custom_call.1} parent=39 // pred_region
          %s308 = ssub.s32 1, %s230
          %s309 = smul.u32 %s303, 16
          %s310 = smul.u32 %s24, 72
          %s311 = sadd.s32 %s309, %s310
          %s312 = scalar_lea.vmem %s0, %s311
          %s313 = smul.u32 %s308, 24
          %s314 = scalar_lea.vmem [#allocation2], %s313
          %s315 = scalar_lea.sflag [#allocation3], %s308
          %p317 = scmp.lt.u32.totalorder 21, 8
          %p318 = pneg %p317
          // Predicated region
          $region86: #{tpu_custom_call.1} parent=84 // pred_check
            _
          $region87: #{tpu_custom_call.1} parent=84 // pred_check_branch
            %320 = sbr.rel (%p317) target = $region89
          $region88: #{tpu_custom_call.1} parent=84 // pred_region
            %s336 = sand.u32 21, 7
            %p337 = scmp.eq.s32.totalorder %s336, 0
            %p338 = pneg %p337
            // Predicated region
            $region101: #{tpu_custom_call.1} parent=88 // pred_check
              _
            $region102: #{tpu_custom_call.1} parent=88 // pred_check_branch
              %340 = sbr.rel (%p337) target = $region104
            $region103: #{tpu_custom_call.1} parent=88 // pred_region
              %s341 = sand.u32 21, 7
              %s342 = ssub.s32 21, %s341
              %s343 = scalar_lea.vmem %s312, %s342
              %s344 = ssub.s32 21, %s341
              %s345 = scalar_lea.vmem %s314, %s344 [#allocation2]
              loop: start=0, step=1, limit=1
              $region105: #{tpu_custom_call.1} parent=103 // loop_pre_header
                _
              $region106: #{tpu_custom_call.1} parent=103 // loop_header
                %s347 = sphi 0, %s351
                %p348 = scmp.ge.s32.totalorder %s347, 1
                %s352 = sphi %s312, %s312
                %s353 = sphi %s314, %s314
              $region107: #{tpu_custom_call.1} parent=103 // loop_header_branch
                %350 = sbr.rel (%p348) target = $region111
              $region108: #{tpu_custom_call.1} parent=103 // loop_body
                %v354 = vld [vmem:[%s352] sm:$0xff]
                %355 = vst [vmem:[%s353] sm:$0xff] %v354
                %v356 = vld [vmem:[%s352 + $0x8] sm:$0xff]
                %357 = vst [vmem:[%s353 + $0x8] sm:$0xff] %v356
              $region109: #{tpu_custom_call.1} parent=103 // loop_footer
                %s351 = sadd.s32 1, %s347
              $region110: #{tpu_custom_call.1} parent=103 // loop_footer_branch
                %346 = sbr.rel target = $region106
              $region111: #{tpu_custom_call.1} parent=103 // loop_exit
                _
              %s358 = sshll.u32 1, %s341
              %s359 = ssub.s32 %s358, 1
              loop: start=0, step=1, limit=1
              $region112: #{tpu_custom_call.1} parent=103 // loop_pre_header
                _
              $region113: #{tpu_custom_call.1} parent=103 // loop_header
                %s361 = sphi 0, %s365
                %p362 = scmp.ge.s32.totalorder %s361, 1
                %s366 = sphi %s343, %s343
                %s367 = sphi %s345, %s345
              $region114: #{tpu_custom_call.1} parent=103 // loop_header_branch
                %364 = sbr.rel (%p362) target = $region118
              $region115: #{tpu_custom_call.1} parent=103 // loop_body
                %v368 = vld [vmem:[%s366] sm:%s359]
                %369 = vst [vmem:[%s367] sm:%s359] %v368
              $region116: #{tpu_custom_call.1} parent=103 // loop_footer
                %s365 = sadd.s32 1, %s361
              $region117: #{tpu_custom_call.1} parent=103 // loop_footer_branch
                %360 = sbr.rel target = $region113
              $region118: #{tpu_custom_call.1} parent=103 // loop_exit
                _
            $region104: #{tpu_custom_call.1} parent=88 // pred_fallthru
              _
          $region89: #{tpu_custom_call.1} parent=84 // pred_fallthru
            _
          // Predicated region
          $region90: #{tpu_custom_call.1} parent=84 // pred_check
            %p321 = pneg %p317
          $region91: #{tpu_custom_call.1} parent=84 // pred_check_branch
            %323 = sbr.rel (%p321) target = $region93
          $region92: #{tpu_custom_call.1} parent=84 // pred_region
            %s324 = sshll.u32 1, 21
            %s325 = ssub.s32 %s324, 1
            loop: start=0, step=1, limit=1
            $region94: #{tpu_custom_call.1} parent=92 // loop_pre_header
              _
            $region95: #{tpu_custom_call.1} parent=92 // loop_header
              %s327 = sphi 0, %s331
              %p328 = scmp.ge.s32.totalorder %s327, 1
              %s332 = sphi %s312, %s312
              %s333 = sphi %s314, %s314
            $region96: #{tpu_custom_call.1} parent=92 // loop_header_branch
              %330 = sbr.rel (%p328) target = $region100
            $region97: #{tpu_custom_call.1} parent=92 // loop_body
              %v334 = vld [vmem:[%s332] sm:%s325]
              %335 = vst [vmem:[%s333] sm:%s325] %v334
            $region98: #{tpu_custom_call.1} parent=92 // loop_footer
              %s331 = sadd.s32 1, %s327
            $region99: #{tpu_custom_call.1} parent=92 // loop_footer_branch
              %326 = sbr.rel target = $region95
            $region100: #{tpu_custom_call.1} parent=92 // loop_exit
              _
          $region93: #{tpu_custom_call.1} parent=84 // pred_fallthru
            _
          // Predicated region
          $region119: #{tpu_custom_call.1} parent=84 // pred_check
            _
          $region120: #{tpu_custom_call.1} parent=84 // pred_check_branch
            %372 = sbr.rel (0) target = $region122
          $region121: #{tpu_custom_call.1} parent=84 // pred_region
            %373 = vsyncadd %s315, 336
          $region122: #{tpu_custom_call.1} parent=84 // pred_fallthru
            _
        $region85: #{tpu_custom_call.1} parent=39 // pred_fallthru
          _
        %v374 = vld [vmem:[%s298] sm:$0xff]
        %v375 = vld [vmem:[%s298 + $0x8] sm:$0xff]
        %v376 = vld [vmem:[%s298 + $0x10] sm:$0x1f]
        %v377 = vld [vmem:[%s1] sm:$0xff]
        %v378 = vld [vmem:[%s1 + $0x8] sm:$0xff]
        %v379 = vld [vmem:[%s1 + $0x10] sm:$0xff]
        %v380 = vld [vmem:[%s1 + $0x18] sm:$0xff]
        %v381 = vld [vmem:[%s1 + $0x20] sm:$0xff]
        %v382 = vld [vmem:[%s1 + $0x28] sm:$0xff]
        %v383 = vld [vmem:[%s1 + $0x30] sm:$0xff]
        %v384 = vld [vmem:[%s1 + $0x38] sm:$0xff]
        %v385 = vld [vmem:[%s1 + $0x40] sm:$0xff]
        %v386 = vld [vmem:[%s1 + $0x48] sm:$0xff]
        %v387 = vld [vmem:[%s1 + $0x50] sm:$0xff]
        %v388 = vld [vmem:[%s1 + $0x58] sm:$0xff]
        %v389 = vld [vmem:[%s1 + $0x60] sm:$0xff]
        %v390 = vld [vmem:[%s1 + $0x68] sm:$0xff]
        %v391 = vld [vmem:[%s1 + $0x70] sm:$0xff]
        %v392 = vld [vmem:[%s1 + $0x78] sm:$0xff]
        %393 = vmatprep.subr.mxu0 0.0
        %394 = vmatpush1.msra.mxu0 %v392
        %395 = vmatprep.subr.mxu0 0.0
        %396 = vmatpush1.msra.mxu0 %v391
        %397 = vmatprep.subr.mxu0 0.0
        %398 = vmatpush1.msra.mxu0 %v390
        %399 = vmatprep.subr.mxu0 0.0
        %400 = vmatpush1.msra.mxu0 %v389
        %401 = vmatprep.subr.mxu0 0.0
        %402 = vmatpush1.msra.mxu0 %v388
        %403 = vmatprep.subr.mxu0 0.0
        %404 = vmatpush1.msra.mxu0 %v387
        %405 = vmatprep.subr.mxu0 0.0
        %406 = vmatpush1.msra.mxu0 %v386
        %407 = vmatprep.subr.mxu0 0.0
        %408 = vmatpush1.msra.mxu0 %v385
        %409 = vmatprep.subr.mxu0 0.0
        %410 = vmatpush1.msra.mxu0 %v384
        %411 = vmatprep.subr.mxu0 0.0
        %412 = vmatpush1.msra.mxu0 %v383
        %413 = vmatprep.subr.mxu0 0.0
        %414 = vmatpush1.msra.mxu0 %v382
        %415 = vmatprep.subr.mxu0 0.0
        %416 = vmatpush1.msra.mxu0 %v381
        %417 = vmatprep.subr.mxu0 0.0
        %418 = vmatpush1.msra.mxu0 %v380
        %419 = vmatprep.subr.mxu0 0.0
        %420 = vmatpush1.msra.mxu0 %v379
        %421 = vmatprep.subr.mxu0 0.0
        %422 = vmatpush1.msra.mxu0 %v378
        %423 = vmatprep.subr.mxu0 0.0
        %424 = vmatpush1.msra.mxu0 %v377
        %425 = vmatprep.subr.mxu0 0.0
        %426 = vmatpush2.msra.mxu0 0.0
        %427 = vmatprep.subr.mxu0 0.0
        %428 = vmatpush2.msra.mxu0 0.0
        %429 = vmatprep.subr.mxu0 0.0
        %430 = vmatpush2.msra.mxu0 0.0
        %431 = vmatprep.subr.mxu0 0.0
        %432 = vmatpush2.msra.mxu0 0.0
        %433 = vmatprep.subr.mxu0 0.0
        %434 = vmatpush2.msra.mxu0 0.0
        %435 = vmatprep.subr.mxu0 0.0
        %436 = vmatpush2.msra.mxu0 0.0
        %437 = vmatprep.subr.mxu0 0.0
        %438 = vmatpush2.msra.mxu0 0.0
        %439 = vmatprep.subr.mxu0 0.0
        %440 = vmatpush2.msra.mxu0 0.0
        %441 = vmatprep.subr.mxu0 0.0
        %442 = vmatpush2.msra.mxu0 0.0
        %443 = vmatprep.subr.mxu0 0.0
        %444 = vmatpush2.msra.mxu0 0.0
        %445 = vmatprep.subr.mxu0 0.0
        %446 = vmatpush2.msra.mxu0 0.0
        %447 = vmatprep.subr.mxu0 0.0
        %448 = vmatpush2.msra.mxu0 0.0
        %449 = vmatprep.subr.mxu0 0.0
        %450 = vmatpush2.msra.mxu0 0.0
        %451 = vmatprep.subr.mxu0 0.0
        %452 = vmatpush2.msra.mxu0 0.0
        %453 = vmatprep.subr.mxu0 0.0
        %454 = vmatpush2.msra.mxu0 0.0
        %455 = vmatprep.subr.mxu0 0.0
        %456 = vmatpush2.msra.mxu0 0.0
        %457 = vmatprep.mubr.f32.mxu0 0.0
        %458 = vmatmul.mubr.f32.gmra.mxu0 %v374
        %v459 = vpop.f32.mrf.mxu0
        %v460 = vadd.f32 0.0, %v459
        %v461 = vpop.f32.mrf.mxu0
        %462 = vmatprep.mubr.f32.mxu0 0.0
        %463 = vmatmul.mubr.f32.gmra.mxu0 %v375
        %v464 = vpop.f32.mrf.mxu0
        %v465 = vadd.f32 0.0, %v464
        %v466 = vpop.f32.mrf.mxu0
        %467 = vmatprep.mubr.f32.mxu0 0.0
        %468 = vmatmul.mubr.f32.gmra.mxu0 %v376
        %v469 = vpop.f32.mrf.mxu0
        %v470 = vadd.f32 0.0, %v469
        %v471 = vpop.f32.mrf.mxu0
        %472 = vdwg.mxu0
        %v473 = vld [vmem:[%s2] sm:$0x1]
        %v474 = vlaneseq
        %v475 = vshrl.u32 %v474, 7
        %v476 = vsub.s32 0, %v475
        %v477 = vrot.slane %v473, %v476
        %v478 = vmul.f32 %v460, %v477
        %v479 = vmul.f32 %v465, %v477
        %vm482 = vcmask 1042432
        %v483 = vrot.slane %v478, 5
        %v484 = vrot.slane %v479, 5
        %v485 = vsel %vm482, %v483, %v484
        %v489 = vadd.f32 %v460, %v483
        %v490 = vadd.f32 %v465, %v485
        %v491 = vadd.f32 %v470, %v484
        %v492 = vld [vmem:[%s2 + $0x1] sm:$0x1]
        %v493 = vlaneseq
        %v494 = vshrl.u32 %v493, 7
        %v495 = vsub.s32 0, %v494
        %v496 = vrot.slane %v492, %v495
        %v497 = vmul.f32 %v460, %v496
        %v498 = vmul.f32 %v465, %v496
        %v499 = vmul.f32 %v470, %v496
        %vm503 = vcmask 1041408
        %v504 = vrot.slane %v497, 6
        %v505 = vrot.slane %v498, 6
        %v506 = vsel %vm503, %v504, %v505
        %v507 = vrot.slane %v499, 6
        %v508 = vsel %vm503, %v505, %v507
        %v512 = vadd.f32 %v489, %v504
        %v513 = vadd.f32 %v490, %v506
        %v514 = vadd.f32 %v491, %v508
        %v515 = vld [vmem:[%s2 + $0x2] sm:$0x1]
        %v516 = vlaneseq
        %v517 = vshrl.u32 %v516, 7
        %v518 = vsub.s32 0, %v517
        %v519 = vrot.slane %v515, %v518
        %v520 = vmul.f32 %v460, %v519
        %v521 = vmul.f32 %v465, %v519
        %v522 = vmul.f32 %v470, %v519
        %vm526 = vcmask 1040384
        %v527 = vrot.slane %v520, 7
        %v528 = vrot.slane %v521, 7
        %v529 = vsel %vm526, %v527, %v528
        %v530 = vrot.slane %v522, 7
        %v531 = vsel %vm526, %v528, %v530
        %v535 = vadd.f32 %v512, %v527
        %v536 = vadd.f32 %v513, %v529
        %v537 = vadd.f32 %v514, %v531
        %v538 = vld [vmem:[%s2 + $0x3] sm:$0x1]
        %v539 = vlaneseq
        %v540 = vshrl.u32 %v539, 7
        %v541 = vsub.s32 0, %v540
        %v542 = vrot.slane %v538, %v541
        %v543 = vmul.f32 %v460, %v542
        %v544 = vmul.f32 %v465, %v542
        %v545 = vmul.f32 %v470, %v542
        %v546 = vadd.f32 %v535, %v543
        %v547 = vadd.f32 %v536, %v544
        %v548 = vadd.f32 %v537, %v545
        %v549 = vld [vmem:[%s3] sm:$0x1]
        %v550 = vlaneseq
        %v551 = vshrl.u32 %v550, 7
        %v552 = vsub.s32 0, %v551
        %v553 = vrot.slane %v549, %v552
        %v554 = vmul.f32 %v460, %v553
        %v555 = vmul.f32 %v465, %v553
        %v556 = vmul.f32 %v470, %v553
        %vm560 = vcmask 1046528
        %v561 = vrot.slane %v554, 1
        %v562 = vrot.slane %v555, 1
        %v563 = vsel %vm560, %v561, %v562
        %v564 = vrot.slane %v556, 1
        %v565 = vsel %vm560, %v562, %v564
        %v569 = vadd.f32 %v546, %v563
        %v570 = vadd.f32 %v547, %v565
        %v571 = vadd.f32 %v548, %v564
        %v572 = vld [vmem:[%s3 + $0x1] sm:$0x1]
        %v573 = vlaneseq
        %v574 = vshrl.u32 %v573, 7
        %v575 = vsub.s32 0, %v574
        %v576 = vrot.slane %v572, %v575
        %v577 = vmul.f32 %v460, %v576
        %v578 = vmul.f32 %v465, %v576
        %v579 = vmul.f32 %v470, %v576
        %vm583 = vcmask 1045504
        %v584 = vrot.slane %v577, 2
        %v585 = vrot.slane %v578, 2
        %v586 = vsel %vm583, %v584, %v585
        %v587 = vrot.slane %v579, 2
        %v588 = vsel %vm583, %v585, %v587
        %v592 = vadd.f32 %v569, %v586
        %v593 = vadd.f32 %v570, %v588
        %v594 = vadd.f32 %v571, %v587
        %v595 = vld [vmem:[%s4] sm:$0xff]
        %v596 = vld [vmem:[%s4 + $0x8] sm:$0xff]
        %v597 = vld [vmem:[%s4 + $0x10] sm:$0xff]
        %v598 = vld [vmem:[%s4 + $0x18] sm:$0xff]
        %v599 = vld [vmem:[%s4 + $0x20] sm:$0xff]
        %v600 = vld [vmem:[%s4 + $0x28] sm:$0xff]
        %v601 = vld [vmem:[%s4 + $0x30] sm:$0xff]
        %v602 = vld [vmem:[%s4 + $0x38] sm:$0xff]
        %v603 = vld [vmem:[%s4 + $0x40] sm:$0xff]
        %v604 = vld [vmem:[%s4 + $0x48] sm:$0xff]
        %v605 = vld [vmem:[%s4 + $0x50] sm:$0xff]
        %v606 = vld [vmem:[%s4 + $0x58] sm:$0xff]
        %v607 = vld [vmem:[%s4 + $0x60] sm:$0xff]
        %v608 = vld [vmem:[%s4 + $0x68] sm:$0xff]
        %v609 = vld [vmem:[%s4 + $0x70] sm:$0xff]
        %v610 = vld [vmem:[%s4 + $0x78] sm:$0xff]
        %v611 = vld [vmem:[%s5] sm:$0x1]
        %v613 = vlaneseq
        %v614 = vshrl.u32 %v613, 7
        %v615 = vsub.s32 0, %v614
        %v616 = vrot.slane %v611, %v615
        %vm621 = vcmask 1044480
        %v622 = vrot.slane %v592, 3
        %v623 = vrot.slane %v593, 3
        %v624 = vsel %vm621, %v622, %v623
        %v625 = vrot.slane %v594, 3
        %v626 = vsel %vm621, %v623, %v625
        %629 = vmatprep.subr.mxu0 0.0
        %630 = vmatpush1.msra.mxu0 %v610
        %631 = vmatprep.subr.mxu0 0.0
        %632 = vmatpush1.msra.mxu0 %v609
        %633 = vmatprep.subr.mxu0 0.0
        %634 = vmatpush1.msra.mxu0 %v608
        %635 = vmatprep.subr.mxu0 0.0
        %636 = vmatpush1.msra.mxu0 %v607
        %637 = vmatprep.subr.mxu0 0.0
        %638 = vmatpush1.msra.mxu0 %v606
        %639 = vmatprep.subr.mxu0 0.0
        %640 = vmatpush1.msra.mxu0 %v605
        %641 = vmatprep.subr.mxu0 0.0
        %642 = vmatpush1.msra.mxu0 %v604
        %643 = vmatprep.subr.mxu0 0.0
        %644 = vmatpush1.msra.mxu0 %v603
        %645 = vmatprep.subr.mxu0 0.0
        %646 = vmatpush1.msra.mxu0 %v602
        %647 = vmatprep.subr.mxu0 0.0
        %648 = vmatpush1.msra.mxu0 %v601
        %649 = vmatprep.subr.mxu0 0.0
        %650 = vmatpush1.msra.mxu0 %v600
        %651 = vmatprep.subr.mxu0 0.0
        %652 = vmatpush1.msra.mxu0 %v599
        %653 = vmatprep.subr.mxu0 0.0
        %654 = vmatpush1.msra.mxu0 %v598
        %655 = vmatprep.subr.mxu0 0.0
        %656 = vmatpush1.msra.mxu0 %v597
        %657 = vmatprep.subr.mxu0 0.0
        %658 = vmatpush1.msra.mxu0 %v596
        %659 = vmatprep.subr.mxu0 0.0
        %660 = vmatpush1.msra.mxu0 %v595
        %661 = vmatprep.subr.mxu0 0.0
        %662 = vmatpush2.msra.mxu0 0.0
        %663 = vmatprep.subr.mxu0 0.0
        %664 = vmatpush2.msra.mxu0 0.0
        %665 = vmatprep.subr.mxu0 0.0
        %666 = vmatpush2.msra.mxu0 0.0
        %667 = vmatprep.subr.mxu0 0.0
        %668 = vmatpush2.msra.mxu0 0.0
        %669 = vmatprep.subr.mxu0 0.0
        %670 = vmatpush2.msra.mxu0 0.0
        %671 = vmatprep.subr.mxu0 0.0
        %672 = vmatpush2.msra.mxu0 0.0
        %673 = vmatprep.subr.mxu0 0.0
        %674 = vmatpush2.msra.mxu0 0.0
        %675 = vmatprep.subr.mxu0 0.0
        %676 = vmatpush2.msra.mxu0 0.0
        %677 = vmatprep.subr.mxu0 0.0
        %678 = vmatpush2.msra.mxu0 0.0
        %679 = vmatprep.subr.mxu0 0.0
        %680 = vmatpush2.msra.mxu0 0.0
        %681 = vmatprep.subr.mxu0 0.0
        %682 = vmatpush2.msra.mxu0 0.0
        %683 = vmatprep.subr.mxu0 0.0
        %684 = vmatpush2.msra.mxu0 0.0
        %685 = vmatprep.subr.mxu0 0.0
        %686 = vmatpush2.msra.mxu0 0.0
        %687 = vmatprep.subr.mxu0 0.0
        %688 = vmatpush2.msra.mxu0 0.0
        %689 = vmatprep.subr.mxu0 0.0
        %690 = vmatpush2.msra.mxu0 0.0
        %691 = vmatprep.subr.mxu0 0.0
        %692 = vmatpush2.msra.mxu0 0.0
        %693 = vmatprep.mubr.f32.mxu0 0.0
        %694 = vmatmul.mubr.f32.gmra.mxu0 %v624
        %v695 = vpop.f32.mrf.mxu0
        %v696 = vadd.f32 %v616, %v695
        %v697 = vpop.f32.mrf.mxu0
        %698 = vmatprep.mubr.f32.mxu0 0.0
        %699 = vmatmul.mubr.f32.gmra.mxu0 %v626
        %v700 = vpop.f32.mrf.mxu0
        %v701 = vadd.f32 %v616, %v700
        %v702 = vpop.f32.mrf.mxu0
        %703 = vdwg.mxu0
        %v704 = vmax.f32 %v696, 0.0
        %v705 = vmax.f32 %v701, 0.0
        %706 = vst [vmem:[%s217] sm:$0xff] %v704
        %707 = vst [vmem:[%s217 + $0x8] sm:$0xff] %v705
        %s708 = sand.u32 %s147, 1
        %s709 = scalar_lea.sflag [#allocation5], %s708
        %s710 = sand.u32 %s147, 1
        %s711 = smul.addr %s710, 16
        %s712 = scalar_lea.vmem [#allocation4], %s711
        // Predicated region
        $region123: #{tpu_custom_call.1} parent=39 // pred_check
          %p713 = pneg %p157
        $region124: #{tpu_custom_call.1} parent=39 // pred_check_branch
          %715 = sbr.rel (%p713) target = $region126
        $region125: #{tpu_custom_call.1} parent=39 // pred_region
          %s716 = smul.u32 2, %s25
          %s718 = ssub.s32 256, 256
          %719 = vsyncadd %s709, %s718
          %s720 = smul.addr %s24, 8
          %s721 = sadd.s32 %s716, %s720
          %s722 = smul.addr %s721, 128
          %s723 = scalar_lea.hbm %s6, %s722
          %s724 = sshll.u32 %s712, 4
          %s725 = int_to_ptr.vmem [resolvable:$true] %s724
          %730 = dma.vmem_to_hbm [thread:$0]  %s725, 256, %s723, %s709, 128, 128, 8
        $region126: #{tpu_custom_call.1} parent=39 // pred_fallthru
          _
      $region40: #{tpu_custom_call.1} parent=5 // pred_fallthru
        _
      %p731 = scmp.le.s32.totalorder 2, %s15
      // Predicated region
      $region127: #{tpu_custom_call.1} parent=5 // pred_check
        %p732 = pneg %p731
      $region128: #{tpu_custom_call.1} parent=5 // pred_check_branch
        %734 = sbr.rel (%p732) target = $region130
      $region129: #{tpu_custom_call.1} parent=5 // pred_region
        %s735 = ssub.s32 %s15, 2
        // Predicated region
        $region131: #{tpu_custom_call.1} parent=129 // pred_check
          %p736 = pneg %p163
        $region132: #{tpu_custom_call.1} parent=129 // pred_check_branch
          %738 = sbr.rel (%p736) target = $region134
        $region133: #{tpu_custom_call.1} parent=129 // pred_region
          %s739 = sand.u32 %s148, 1
          %s740 = scalar_lea.sflag [#allocation5], %s739
          %s741 = sand.u32 %s148, 1
          %s742 = smul.addr %s741, 16
          %s743 = scalar_lea.vmem [#allocation4], %s742
          %744 = dma.done %s740, 256
        $region134: #{tpu_custom_call.1} parent=129 // pred_fallthru
          _
      $region130: #{tpu_custom_call.1} parent=5 // pred_fallthru
        _
    $region6: #{tpu_custom_call.1} parent=1 // loop_footer
      %s19 = sadd.s32 1, %s15
    $region7: #{tpu_custom_call.1} parent=1 // loop_footer_branch
      %14 = sbr.rel target = $region3
    $region8: #{tpu_custom_call.1} parent=1 // loop_exit
      _
    %745 = vsyncpa [#allocation5], 1
    %s746 = scalar_lea.sflag [#allocation5], 1
    %747 = vsyncpa %s746, 1
  %748 = vsyncmov [#allocation3]
  %s749 = vpop.sfrf %748
  %p750 = scmp.eq.s32.totalorder %s749, 0
  %p751 = pneg %p750
  %753 = shalt.err (%p751)
  %s754 = scalar_lea.sflag [#allocation3], 1
  %755 = vsyncmov %s754
  %s756 = vpop.sfrf %755
  %p757 = scmp.eq.s32.totalorder %s756, 0
  %p758 = pneg %p757
  %760 = shalt.err (%p758)

</llo_original>
